<compile_context>
chip_gen: v7x
topology: tpu7x:2x2x1
jax: 0.10.0
libtpu: 0.0.40
codegen_flags: <defaults>
</compile_context>

<pallas_src>
import functools

import jax
import jax.numpy as jnp
from jax.experimental import pallas as pl
from jax.experimental.pallas import tpu as pltpu


def _nda_kernel(*refs, dropout_p, threshold, eps):
    if dropout_p > 0.0:
        x_ref, res_ref, bits_ref, gamma_ref, beta_ref, o_ref = refs
    else:
        x_ref, res_ref, gamma_ref, beta_ref, o_ref = refs

    # ---- 'n' : LayerNorm over last dim -------------------------------------
    x = x_ref[...].astype(jnp.float32)                     # (TR, D)
    mean = jnp.mean(x, axis=-1, keepdims=True)             # XLU reduction
    centered = x - mean
    var = jnp.mean(centered * centered, axis=-1, keepdims=True)
    rstd = jax.lax.rsqrt(var + jnp.float32(eps))
    y = (centered * rstd) * gamma_ref[...].astype(jnp.float32) \
        + beta_ref[...].astype(jnp.float32)

    # ---- 'd' : Dropout (inverted scaling, integer-threshold mask) ----------
    if dropout_p > 0.0:
        # bits are uniform int32 (bitcast of uniform uint32); signed compare
        # against threshold = round(p * 2^32) - 2^31 keeps exactly (1-p) mass.
        keep = bits_ref[...] >= jnp.int32(threshold)
        scale = jnp.float32(1.0 / (1.0 - dropout_p))
        y = jnp.where(keep, y * scale, jnp.zeros_like(y))

    # ---- 'a' : residual add -------------------------------------------------
    y = y + res_ref[...].astype(jnp.float32)

    o_ref[...] = y.astype(o_ref.dtype)


def pre_post_processing(tensor, input_tensor, gamma, beta,
                        *, dropout_p=0.1, seed=0, eps=1e-5, tile_rows=None):
    """Fused LayerNorm + Dropout + residual-add (sequence='nda')."""
    B, T, D = tensor.shape
    rows = B * T
    dtype = tensor.dtype
    itemsize = jnp.dtype(dtype).itemsize
    use_dropout = float(dropout_p) > 0.0

    # ---- pick a large row tile from a VMEM budget ---------------------------
    # streamed arrays: x, residual, (bits), output; each double-buffered.
    if tile_rows is None:
        stream_bytes_per_row = 2 * D * (3 * itemsize + (4 if use_dropout else 0))
        budget = 24 * 1024 * 1024          # well under v7x's 64 MiB physical VMEM
        tile_rows = budget // max(stream_bytes_per_row, 1)
        tile_rows = max(8, min(1024, (tile_rows // 8) * 8))
    # never tile wider than the (8-rounded) problem itself
    rows_r8 = ((rows + 7) // 8) * 8
    tile_rows = max(8, min((tile_rows // 8) * 8, rows_r8))

    grid0 = pl.cdiv(rows, tile_rows)
    rows_p = grid0 * tile_rows
    pad = rows_p - rows

    xf = tensor.reshape(rows, D)
    rf = input_tensor.reshape(rows, D)
    if pad:
        xf = jnp.pad(xf, ((0, pad), (0, 0)))
        rf = jnp.pad(rf, ((0, pad), (0, 0)))
    g2 = gamma.reshape(1, D)
    b2 = beta.reshape(1, D)

    row_spec = pl.BlockSpec((tile_rows, D), lambda i: (i, 0))
    vec_spec = pl.BlockSpec((1, D), lambda i: (0, 0))

    operands = [xf, rf]
    in_specs = [row_spec, row_spec]
    threshold = 0
    if use_dropout:
        # uniform uint32 bits -> bitcast to int32 (bijection, still uniform).
        key = jax.random.PRNGKey(seed)
        ubits = jax.random.bits(key, (rows_p, D), dtype=jnp.uint32)
        ibits = jax.lax.bitcast_convert_type(ubits, jnp.int32)
        threshold = int(round(float(dropout_p) * 2.0**32)) - 2**31
        threshold = max(-(2**31), min(2**31 - 1, threshold))
        operands.append(ibits)
        in_specs.append(row_spec)
    operands += [g2, b2]
    in_specs += [vec_spec, vec_spec]

    kernel = functools.partial(_nda_kernel,
                               dropout_p=float(dropout_p) if use_dropout else 0.0,
                               threshold=threshold,
                               eps=float(eps))

    out = pl.pallas_call(
        kernel,
        out_shape=jax.ShapeDtypeStruct((rows_p, D), dtype),
        grid=(grid0,),
        in_specs=in_specs,
        out_specs=row_spec,
        compiler_params=pltpu.CompilerParams(
            dimension_semantics=("parallel",),   # independent row tiles -> dual-TC on v7x
            vmem_limit_bytes=48 * 1024 * 1024,
        ),
    )(*operands)

    if pad:
        out = out[:rows]
    return out.reshape(B, T, D)


if __name__ == "__main__":
    B, T, D = 2, 8, 32          # batch, seq, d_model (small toy shapes)
    dropout_p = 0.1

    key = jax.random.PRNGKey(0)
    k1, k2 = jax.random.split(key)
    x = jax.random.normal(k1, (B, T, D), dtype=jnp.float32)
    residual = jax.random.normal(k2, (B, T, D), dtype=jnp.float32)

    # LayerNorm(elementwise_affine=True) default init: weight=1, bias=0.
    gamma = jnp.ones((D,), dtype=jnp.float32)
    beta = jnp.zeros((D,), dtype=jnp.float32)

    # Training-mode path with dropout.
    out = pre_post_processing(x, residual, gamma, beta,
                              dropout_p=dropout_p, seed=1234)
    jax.block_until_ready(out)
    assert out.shape == (B, T, D)
    assert bool(jnp.all(jnp.isfinite(out)))

    # Sanity check (dropout-free path) against a plain-JAX reference.
    out_nodrop = pre_post_processing(x, residual, gamma, beta,
                                     dropout_p=0.0, seed=0)
    jax.block_until_ready(out_nodrop)
    mean = jnp.mean(x, axis=-1, keepdims=True)
    var = jnp.mean((x - mean) ** 2, axis=-1, keepdims=True)
    ref = (x - mean) / jnp.sqrt(var + 1e-5) * gamma + beta + residual
    assert jnp.allclose(out_nodrop, ref, atol=1e-5, rtol=1e-5)

    print("KERNEL_OK")
</pallas_src>

<mosaic_0001>
module attributes {stable_mosaic.version = 11 : i64} {
  func.func @_nda_kernel(%arg0: i32, %arg1: memref<16x32xf32, #tpu.memory_space<vmem>>, %arg2: memref<16x32xf32, #tpu.memory_space<vmem>>, %arg3: memref<16x32xi32, #tpu.memory_space<vmem>>, %arg4: memref<1x32xf32, #tpu.memory_space<vmem>>, %arg5: memref<1x32xf32, #tpu.memory_space<vmem>>, %arg6: memref<16x32xf32, #tpu.memory_space<vmem>>) attributes {dimension_semantics = [#tpu.dimension_semantics<parallel>], iteration_bounds = array<i64: 1>, scalar_prefetch = 0 : i64, scratch_operands = 0 : i64, tpu.core_type = #tpu.core_type<tc>, window_params = [{transform_indices = @transform_0, window_bounds = array<i64: 16, 32>}, {transform_indices = @transform_1, window_bounds = array<i64: 16, 32>}, {transform_indices = @transform_2, window_bounds = array<i64: 16, 32>}, {pipeline_mode = #tpu.pipeline_mode<synchronous>, transform_indices = @transform_3, window_bounds = array<i64: 1, 32>}, {pipeline_mode = #tpu.pipeline_mode<synchronous>, transform_indices = @transform_4, window_bounds = array<i64: 1, 32>}, {transform_indices = @transform_5, window_bounds = array<i64: 16, 32>}]} {
    %c0 = arith.constant 0 : index
    %c0_0 = arith.constant 0 : index
    %0 = vector.load %arg1[%c0, %c0_0] : memref<16x32xf32, #tpu.memory_space<vmem>>, vector<16x32xf32>
    %cst = arith.constant dense<0.000000e+00> : vector<16xf32>
    %1 = vector.multi_reduction <add>, %0, %cst [1] : vector<16x32xf32> to vector<16xf32>
    %2 = vector.shape_cast %1 : vector<16xf32> to vector<16x1xf32>
    %cst_1 = arith.constant 3.200000e+01 : f32
    %3 = vector.broadcast %cst_1 : f32 to vector<16x1xf32>
    %4 = arith.divf %2, %3 : vector<16x1xf32>
    %5 = vector.broadcast %4 : vector<16x1xf32> to vector<16x32xf32>
    %6 = arith.subf %0, %5 : vector<16x32xf32>
    %7 = arith.mulf %6, %6 : vector<16x32xf32>
    %cst_2 = arith.constant dense<0.000000e+00> : vector<16xf32>
    %8 = vector.multi_reduction <add>, %7, %cst_2 [1] : vector<16x32xf32> to vector<16xf32>
    %9 = vector.shape_cast %8 : vector<16xf32> to vector<16x1xf32>
    %cst_3 = arith.constant 3.200000e+01 : f32
    %10 = vector.broadcast %cst_3 : f32 to vector<16x1xf32>
    %11 = arith.divf %9, %10 : vector<16x1xf32>
    %cst_4 = arith.constant 9.99999974E-6 : f32
    %12 = vector.broadcast %cst_4 : f32 to vector<16x1xf32>
    %13 = arith.addf %11, %12 : vector<16x1xf32>
    %14 = math.rsqrt %13 : vector<16x1xf32>
    %15 = vector.broadcast %14 : vector<16x1xf32> to vector<16x32xf32>
    %16 = arith.mulf %6, %15 : vector<16x32xf32>
    %c0_5 = arith.constant 0 : index
    %c0_6 = arith.constant 0 : index
    %17 = vector.load %arg4[%c0_5, %c0_6] : memref<1x32xf32, #tpu.memory_space<vmem>>, vector<1x32xf32>
    %18 = vector.broadcast %17 : vector<1x32xf32> to vector<16x32xf32>
    %19 = arith.mulf %16, %18 : vector<16x32xf32>
    %c0_7 = arith.constant 0 : index
    %c0_8 = arith.constant 0 : index
    %20 = vector.load %arg5[%c0_7, %c0_8] : memref<1x32xf32, #tpu.memory_space<vmem>>, vector<1x32xf32>
    %21 = vector.broadcast %20 : vector<1x32xf32> to vector<16x32xf32>
    %22 = arith.addf %19, %21 : vector<16x32xf32>
    %c0_9 = arith.constant 0 : index
    %c0_10 = arith.constant 0 : index
    %23 = vector.load %arg3[%c0_9, %c0_10] : memref<16x32xi32, #tpu.memory_space<vmem>>, vector<16x32xi32>
    %c-1717986918_i32 = arith.constant -1717986918 : i32
    %24 = vector.broadcast %c-1717986918_i32 : i32 to vector<16x32xi32>
    %25 = arith.cmpi sge, %23, %24 : vector<16x32xi32>
    %cst_11 = arith.constant 1.11111116 : f32
    %26 = vector.broadcast %cst_11 : f32 to vector<16x32xf32>
    %27 = arith.mulf %22, %26 : vector<16x32xf32>
    %cst_12 = arith.constant 0.000000e+00 : f32
    %28 = vector.broadcast %cst_12 : f32 to vector<16x32xf32>
    %29 = arith.select %25, %27, %28 : vector<16x32xi1>, vector<16x32xf32>
    %c0_13 = arith.constant 0 : index
    %c0_14 = arith.constant 0 : index
    %30 = vector.load %arg2[%c0_13, %c0_14] : memref<16x32xf32, #tpu.memory_space<vmem>>, vector<16x32xf32>
    %31 = arith.addf %29, %30 : vector<16x32xf32>
    %c0_15 = arith.constant 0 : index
    %c0_16 = arith.constant 0 : index
    %32 = vector.load %arg6[%c0_15, %c0_16] : memref<16x32xf32, #tpu.memory_space<vmem>>, vector<16x32xf32>
    tpu.vector_store %arg6[%c0_15, %c0_16], %31 {strides = array<i32>} : memref<16x32xf32, #tpu.memory_space<vmem>>, vector<16x32xf32>,
    return
  }
  func.func @transform_0(%arg0: i32) -> (i32, i32) {
    %c0_i32 = arith.constant 0 : i32
    %c0_i32_0 = arith.constant 0 : i32
    return %arg0, %c0_i32 : i32, i32
  }
  func.func @transform_1(%arg0: i32) -> (i32, i32) {
    %c0_i32 = arith.constant 0 : i32
    %c0_i32_0 = arith.constant 0 : i32
    return %arg0, %c0_i32 : i32, i32
  }
  func.func @transform_2(%arg0: i32) -> (i32, i32) {
    %c0_i32 = arith.constant 0 : i32
    %c0_i32_0 = arith.constant 0 : i32
    return %arg0, %c0_i32 : i32, i32
  }
  func.func @transform_3(%arg0: i32) -> (i32, i32) {
    %c0_i32 = arith.constant 0 : i32
    %c0_i32_0 = arith.constant 0 : i32
    %c0_i32_1 = arith.constant 0 : i32
    return %c0_i32, %c0_i32_0 : i32, i32
  }
  func.func @transform_4(%arg0: i32) -> (i32, i32) {
    %c0_i32 = arith.constant 0 : i32
    %c0_i32_0 = arith.constant 0 : i32
    %c0_i32_1 = arith.constant 0 : i32
    return %c0_i32, %c0_i32_0 : i32, i32
  }
  func.func @transform_5(%arg0: i32) -> (i32, i32) {
    %c0_i32 = arith.constant 0 : i32
    %c0_i32_0 = arith.constant 0 : i32
    return %arg0, %c0_i32 : i32, i32
  }
}

</mosaic_0001>

<llo_original>
// kernel: tpu_custom_call.1
$region0: #{tpu_custom_call.1}
  #allocation0 [shape = 'u32[]', space=smem, size = 0x4, offset = 0x4, fixed_abs, tag = 'smem constant byte address 0x4 - core index']
  #allocation1 [shape = 'u32[144,128]{1,0:T(1,128)}', space=vmem, size = 0x12000, scoped, tag = 'internal scratch']
  %s0 = inlined_call_operand.hbm [shape: f32[16,32], index: 0, kind: input, shape index: {}]
  %s1 = inlined_call_operand.hbm [shape: f32[16,32], index: 1, kind: input, shape index: {}]
  %s2 = inlined_call_operand.hbm [shape: s32[16,32], index: 2, kind: input, shape index: {}]
  %s3 = inlined_call_operand.vmem [shape: f32[1,32], index: 3, kind: input, shape index: {}]
  %s4 = inlined_call_operand.vmem [shape: f32[1,32], index: 4, kind: input, shape index: {}]
  %s5 = inlined_call_operand.hbm [shape: f32[16,32], index: 5, kind: output, shape index: {}]
  %s6 = sld [smem:[#allocation0]]
  $region42: #{tpu_custom_call.1} parent=0
    _
  %s8 = ssub.s32 1, %s6
  %s9 = scalar_select 0, %s8, %s6
  $region1: #{tpu_custom_call.1} parent=0
    #allocation2 [shape = 'u8[8192]{0}', space=vmem, size = 0x2000, scoped, tag = 'input window, operand 0, single buffered']
    #allocation3 [shape = 's32[1]{0}', space=sflag, size = 0x4, scoped, tag = 'scoped memory for tpu_custom_call.1']
    #allocation4 [shape = 's32[1]{0}', space=sflag, size = 0x4, scoped, tag = 'scoped memory for tpu_custom_call.1']
    #allocation5 [shape = 'u8[8192]{0}', space=vmem, size = 0x2000, scoped, tag = 'input window, operand 1, single buffered']
    #allocation6 [shape = 's32[1]{0}', space=sflag, size = 0x4, scoped, tag = 'scoped memory for tpu_custom_call.1']
    #allocation7 [shape = 'u8[8192]{0}', space=vmem, size = 0x2000, scoped, tag = 'input window, operand 2, single buffered']
    #allocation8 [shape = 'u8[8192]{0}', space=vmem, size = 0x2000, scoped, tag = 'output window, operand 0, single buffered']
    %10 = vsyncpa [#allocation3], 0
    %11 = vsyncpa [#allocation6], 0
    %12 = vsyncpa [#allocation4], 0
    // Predicated region
    $region2: #{tpu_custom_call.1} parent=1 // pred_check
      _
    $region3: #{tpu_custom_call.1} parent=1 // pred_check_branch
      %14 = sbr.rel (0) target = $region5
    $region4: #{tpu_custom_call.1} parent=1 // pred_region
      %s16 = ssub.s32 256, 256
      %17 = vsyncadd [#allocation3], %s16
      %s18 = sshll.u32 [#allocation2], 4
      %s19 = int_to_ptr.vmem [resolvable:$true] %s18
      %24 = dma.hbm_to_vmem [thread:$0]  %s0, 256, %s19, [#allocation3], 128, 128, 8
    $region5: #{tpu_custom_call.1} parent=1 // pred_fallthru
      _
    // Predicated region
    $region6: #{tpu_custom_call.1} parent=1 // pred_check
      _
    $region7: #{tpu_custom_call.1} parent=1 // pred_check_branch
      %26 = sbr.rel (0) target = $region9
    $region8: #{tpu_custom_call.1} parent=1 // pred_region
      %s28 = ssub.s32 256, 256
      %29 = vsyncadd [#allocation6], %s28
      %s30 = sshll.u32 [#allocation5], 4
      %s31 = int_to_ptr.vmem [resolvable:$true] %s30
      %36 = dma.hbm_to_vmem [thread:$0]  %s1, 256, %s31, [#allocation6], 128, 128, 8
    $region9: #{tpu_custom_call.1} parent=1 // pred_fallthru
      _
    // Predicated region
    $region10: #{tpu_custom_call.1} parent=1 // pred_check
      _
    $region11: #{tpu_custom_call.1} parent=1 // pred_check_branch
      %38 = sbr.rel (0) target = $region13
    $region12: #{tpu_custom_call.1} parent=1 // pred_region
      %s40 = ssub.s32 256, 256
      %41 = vsyncadd [#allocation6], %s40
      %s42 = sshll.u32 [#allocation7], 4
      %s43 = int_to_ptr.vmem [resolvable:$true] %s42
      %48 = dma.hbm_to_vmem [thread:$0]  %s2, 256, %s43, [#allocation6], 128, 128, 8
    $region13: #{tpu_custom_call.1} parent=1 // pred_fallthru
      _
    // Predicated region
    $region14: #{tpu_custom_call.1} parent=1 // pred_check
      _
    $region15: #{tpu_custom_call.1} parent=1 // pred_check_branch
      %50 = sbr.rel (0) target = $region17
    $region16: #{tpu_custom_call.1} parent=1 // pred_region
      _
    $region17: #{tpu_custom_call.1} parent=1 // pred_fallthru
      _
    // Predicated region
    $region18: #{tpu_custom_call.1} parent=1 // pred_check
      _
    $region19: #{tpu_custom_call.1} parent=1 // pred_check_branch
      %52 = sbr.rel (0) target = $region21
    $region20: #{tpu_custom_call.1} parent=1 // pred_region
      _
    $region21: #{tpu_custom_call.1} parent=1 // pred_fallthru
      _
    // Predicated region
    $region22: #{tpu_custom_call.1} parent=1 // pred_check
      _
    $region23: #{tpu_custom_call.1} parent=1 // pred_check_branch
      %54 = sbr.rel (0) target = $region25
    $region24: #{tpu_custom_call.1} parent=1 // pred_region
      %55 = dma.done [#allocation3], 256
    $region25: #{tpu_custom_call.1} parent=1 // pred_fallthru
      _
    // Predicated region
    $region26: #{tpu_custom_call.1} parent=1 // pred_check
      _
    $region27: #{tpu_custom_call.1} parent=1 // pred_check_branch
      %57 = sbr.rel (0) target = $region29
    $region28: #{tpu_custom_call.1} parent=1 // pred_region
      %58 = dma.done [#allocation6], 256
    $region29: #{tpu_custom_call.1} parent=1 // pred_fallthru
      _
    // Predicated region
    $region30: #{tpu_custom_call.1} parent=1 // pred_check
      _
    $region31: #{tpu_custom_call.1} parent=1 // pred_check_branch
      %60 = sbr.rel (0) target = $region33
    $region32: #{tpu_custom_call.1} parent=1 // pred_region
      %61 = dma.done [#allocation6], 256
    $region33: #{tpu_custom_call.1} parent=1 // pred_fallthru
      _
    %v62 = vld [vmem:[#allocation2] sm:$0xff]
    %v63 = vld [vmem:[#allocation2 + $0x8] sm:$0xff]
    %vm64 = vcmask 261120
    %v65 = vsel %vm64, %v62, 0.0
    %66 = vadd.xlane.f32.xlu0 %v65
    %v67 = vpop.xlane.xlu0 %66
    %v68 = vsel %vm64, %v63, 0.0
    %69 = vadd.xlane.f32.xlu0 %v68
    %v70 = vpop.xlane.xlu0 %69
    %v71 = vrcp.pop 32.0
    %v72 = vmul.f32 %v67, %v71
    %v73 = vmul.f32 %v70, %v71
    %v74 = vsub.f32 %v62, %v72
    %v75 = vsub.f32 %v63, %v73
    %v76 = vmul.f32 %v74, %v74
    %v77 = vmul.f32 %v75, %v75
    %v78 = vsel %vm64, %v76, 0.0
    %79 = vadd.xlane.f32.xlu0 %v78
    %v80 = vpop.xlane.xlu0 %79
    %v81 = vsel %vm64, %v77, 0.0
    %82 = vadd.xlane.f32.xlu0 %v81
    %v83 = vpop.xlane.xlu0 %82
    %v84 = vmul.f32 %v80, %v71
    %v85 = vmul.f32 %v83, %v71
    %v86 = vadd.f32 %v84, 1e-05
    %v87 = vadd.f32 %v85, 1e-05
    %v88 = vrsqrt.pop %v86
    %v89 = vrsqrt.pop %v87
    %v90 = vmul.f32 %v74, %v88
    %v91 = vmul.f32 %v75, %v89
    %v92 = vld [vmem:[%s3] sm:$0x1]
    %v94 = vlaneseq
    %v95 = vshrl.u32 %v94, 7
    %v96 = vsub.s32 0, %v95
    %v97 = vrot.slane %v92, %v96
    %v99 = vmul.f32 %v90, %v97
    %v100 = vmul.f32 %v91, %v97
    %v101 = vld [vmem:[%s4] sm:$0x1]
    %v103 = vlaneseq
    %v104 = vshrl.u32 %v103, 7
    %v105 = vsub.s32 0, %v104
    %v106 = vrot.slane %v101, %v105
    %v108 = vadd.f32 %v99, %v106
    %v109 = vadd.f32 %v100, %v106
    %v110 = vld [vmem:[#allocation7] sm:$0xff]
    %v111 = vld [vmem:[#allocation7 + $0x8] sm:$0xff]
    %vm112 = vcmp.ge.s32.totalorder %v110, 2576980378
    %vm113 = vcmp.ge.s32.totalorder %v111, 2576980378
    %v114 = vmul.f32 %v108, 1.1111112
    %v115 = vmul.f32 %v109, 1.1111112
    %v116 = vsel %vm112, %v114, 0.0
    %v117 = vsel %vm113, %v115, 0.0
    %v118 = vld [vmem:[#allocation5] sm:$0xff]
    %v119 = vld [vmem:[#allocation5 + $0x8] sm:$0xff]
    %v120 = vadd.f32 %v116, %v118
    %v121 = vadd.f32 %v117, %v119
    %122 = vst.msk [vmem:[#allocation8] sm:$0xff] %vm64, %v120
    %123 = vst.msk [vmem:[#allocation8 + $0x8] sm:$0xff] %vm64, %v121
    // Predicated region
    $region34: #{tpu_custom_call.1} parent=1 // pred_check
      _
    $region35: #{tpu_custom_call.1} parent=1 // pred_check_branch
      %125 = sbr.rel (0) target = $region37
    $region36: #{tpu_custom_call.1} parent=1 // pred_region
      %s127 = ssub.s32 256, 256
      %128 = vsyncadd [#allocation4], %s127
      %s129 = sshll.u32 [#allocation8], 4
      %s130 = int_to_ptr.vmem [resolvable:$true] %s129
      %135 = dma.vmem_to_hbm [thread:$0]  %s130, 256, %s5, [#allocation4], 128, 128, 8
    $region37: #{tpu_custom_call.1} parent=1 // pred_fallthru
      _
    // Predicated region
    $region38: #{tpu_custom_call.1} parent=1 // pred_check
      _
    $region39: #{tpu_custom_call.1} parent=1 // pred_check_branch
      %137 = sbr.rel (0) target = $region41
    $region40: #{tpu_custom_call.1} parent=1 // pred_region
      %138 = dma.done [#allocation4], 256
    $region41: #{tpu_custom_call.1} parent=1 // pred_fallthru
      _
    %139 = vsyncpa [#allocation3], 1
    %140 = vsyncpa [#allocation6], 1
    %141 = vsyncpa [#allocation4], 1

</llo_original>
